<compile_context>
chip_gen: v6e
topology: v6e:2x2x1
jax: 0.10.0
libtpu: 0.0.40
codegen_flags: <defaults>
</compile_context>

<pallas_src>
import functools

import jax
import jax.numpy as jnp
from jax.experimental import pallas as pl
from jax.experimental.pallas import tpu as pltpu

_LANE = 128
_SUBLANE_F32 = 8


def _round_up(x, m):
    return ((x + m - 1) // m) * m


def _pick_tb(batch):
    """Batch tile size.

    - tiny batches: one full block (no padding, no ragged blocks).
    - mid batches: >=2 grid steps so v7x's two TensorCores both get work.
    - large batches: big tiles (fewer grid steps -> closer to HBM roofline),
      capped at 1024 rows (~7 MiB double-buffered working set for MNIST sizes).
    """
    if batch <= 64:
        return batch
    if batch >= 4096:
        return 1024
    return min(1024, _round_up(pl.cdiv(batch, 2), _SUBLANE_F32))


def mlp_kernel(x_ref, w1t_ref, w2t_ref, o_ref):
    # x_ref:   (TB, D)  f32   (flattened images, cast to bf16 in-kernel)
    # w1t_ref: (D, H)   bf16  (fc1.weight pre-transposed)
    # w2t_ref: (H, Cp)  bf16  (fc2.weight pre-transposed, zero-padded to 128 lanes)
    # o_ref:   (TB, Cp) bf16
    x = x_ref[...].astype(jnp.bfloat16)                       # VPU cast, free (mem-bound)
    h = jnp.dot(x, w1t_ref[...], preferred_element_type=jnp.float32)
    h = jnp.maximum(h, 0.0).astype(jnp.bfloat16)              # ReLU, bf16 for 2nd MXU pass
    o_ref[...] = jnp.dot(h, w2t_ref[...],
                         preferred_element_type=jnp.float32).astype(o_ref.dtype)


def prepare_params(w1, w2):
    """One-time, init-time weight prep (hoisted out of the per-call path).

    w1: (hidden, input_size)  -- fc1.weight (PyTorch convention)
    w2: (num_classes, hidden) -- fc2.weight
    Returns (w1t, w2t): bf16, transposed; w2t zero-padded to a lane-dense 128
    output width so stores are unmasked.  w1t needs no padding (feature dim is
    unblocked in the kernel).
    """
    hidden, _ = w1.shape
    num_classes = w2.shape[0]
    c_pad = _round_up(num_classes, _LANE)
    w1t = jnp.transpose(w1).astype(jnp.bfloat16)                       # (D, H)
    w2t = jnp.zeros((hidden, c_pad), jnp.bfloat16).at[:, :num_classes].set(
        jnp.transpose(w2).astype(jnp.bfloat16))                        # (H, Cp)
    return w1t, w2t


@functools.partial(jax.jit, static_argnames=("input_size", "num_classes"))
def mnist_classifier_forward(x, w1t, w2t, *, input_size, num_classes):
    """x: arbitrary shape, flattened to (-1, input_size), f32 (no host-side cast/pad).
    w1t/w2t: pre-prepared weights from prepare_params().
    Returns logits (B, num_classes) in bfloat16."""
    d, hidden = w1t.shape
    c_pad = w2t.shape[1]

    x2d = x.reshape(-1, input_size)            # metadata-only reshape, no copy/cast
    batch = x2d.shape[0]

    tb = _pick_tb(batch)
    grid = (pl.cdiv(batch, tb),)               # ragged final block allowed; OOB rows
                                               # are garbage and sliced off below.

    out = pl.pallas_call(
        mlp_kernel,
        out_shape=jax.ShapeDtypeStruct((batch, c_pad), jnp.bfloat16),
        grid=grid,
        in_specs=[
            pl.BlockSpec((tb, d), lambda i: (i, 0)),
            pl.BlockSpec((d, hidden), lambda i: (0, 0)),   # weights: constant index
            pl.BlockSpec((hidden, c_pad), lambda i: (0, 0)),  # -> DMA'd once per call
        ],
        out_specs=pl.BlockSpec((tb, c_pad), lambda i: (i, 0)),
        compiler_params=pltpu.CompilerParams(
            dimension_semantics=("parallel",),   # shard batch tiles across TCs (v7x)
        ),
    )(x2d, w1t, w2t)

    # Cheap bf16 slice back to num_classes; a consumer that folds this into
    # argmax/loss could take the padded (B, 128) slab directly instead.
    return out[:, :num_classes]


if __name__ == "__main__":
    # Small, MNIST-like shapes: batch=8, 1x16x16 images -> input_size=256,
    # hidden=128, num_classes=10.
    batch, chan, hw = 8, 1, 16
    input_size = chan * hw * hw        # 256
    hidden_size = 128
    num_classes = 10

    key = jax.random.PRNGKey(0)
    kx, k1, k2 = jax.random.split(key, 3)

    x = jax.random.normal(kx, (batch, chan, hw, hw), dtype=jnp.float32)
    # Deterministic init mimicking nn.Linear's uniform(-1/sqrt(fan_in), 1/sqrt(fan_in)).
    b1 = 1.0 / (input_size ** 0.5)
    b2 = 1.0 / (hidden_size ** 0.5)
    w1 = jax.random.uniform(k1, (hidden_size, input_size), jnp.float32, -b1, b1)
    w2 = jax.random.uniform(k2, (num_classes, hidden_size), jnp.float32, -b2, b2)

    # One-time weight prep (transpose + bf16 cast + lane padding), outside the fwd path.
    w1t, w2t = jax.block_until_ready(prepare_params(w1, w2))

    out = mnist_classifier_forward(x, w1t, w2t,
                                   input_size=input_size, num_classes=num_classes)
    out = jax.block_until_ready(out)

    # Sanity check against plain-JAX f32 reference (tolerance relaxed for bf16 math).
    ref = jnp.maximum(x.reshape(-1, input_size) @ w1.T, 0.0) @ w2.T
    out_f32 = out.astype(jnp.float32)
    assert out.shape == (batch, num_classes)
    assert jnp.allclose(out_f32, ref, atol=3e-2, rtol=3e-2), \
        float(jnp.max(jnp.abs(out_f32 - ref)))

    print("KERNEL_OK")
</pallas_src>

<mosaic_0001>
module attributes {stable_mosaic.version = 11 : i64} {
  func.func @mlp_kernel(%arg0: i32, %arg1: memref<8x256xf32, #tpu.memory_space<vmem>>, %arg2: memref<256x128xbf16, #tpu.memory_space<vmem>>, %arg3: memref<128x128xbf16, #tpu.memory_space<vmem>>, %arg4: memref<8x128xbf16, #tpu.memory_space<vmem>>) attributes {dimension_semantics = [#tpu.dimension_semantics<parallel>], iteration_bounds = array<i64: 1>, scalar_prefetch = 0 : i64, scratch_operands = 0 : i64, tpu.core_type = #tpu.core_type<tc>, window_params = [{transform_indices = @transform_0, window_bounds = array<i64: 8, 256>}, {pipeline_mode = #tpu.pipeline_mode<synchronous>, transform_indices = @transform_1, window_bounds = array<i64: 256, 128>}, {pipeline_mode = #tpu.pipeline_mode<synchronous>, transform_indices = @transform_2, window_bounds = array<i64: 128, 128>}, {transform_indices = @transform_3, window_bounds = array<i64: 8, 128>}]} {
    %c0 = arith.constant 0 : index
    %c0_0 = arith.constant 0 : index
    %0 = vector.load %arg1[%c0, %c0_0] : memref<8x256xf32, #tpu.memory_space<vmem>>, vector<8x256xf32>
    %1 = arith.truncf %0 : vector<8x256xf32> to vector<8x256xbf16>
    %c0_1 = arith.constant 0 : index
    %c0_2 = arith.constant 0 : index
    %2 = vector.load %arg2[%c0_1, %c0_2] : memref<256x128xbf16, #tpu.memory_space<vmem>>, vector<256x128xbf16>
    %cst = arith.constant dense<0.000000e+00> : vector<8x128xf32>
    %3 = tpu.matmul %1, %2, %cst {dimension_numbers = #tpu.dot_dimension_numbers<[1], [0], [0], [1], [0, 0, 1, 1], [], []>} : vector<8x256xbf16>, vector<256x128xbf16>, vector<8x128xf32> -> vector<8x128xf32>
    %cst_3 = arith.constant 0.000000e+00 : f32
    %4 = vector.broadcast %cst_3 : f32 to vector<8x128xf32>
    %5 = arith.maximumf %3, %4 : vector<8x128xf32>
    %6 = arith.truncf %5 : vector<8x128xf32> to vector<8x128xbf16>
    %c0_4 = arith.constant 0 : index
    %c0_5 = arith.constant 0 : index
    %7 = vector.load %arg3[%c0_4, %c0_5] : memref<128x128xbf16, #tpu.memory_space<vmem>>, vector<128x128xbf16>
    %cst_6 = arith.constant dense<0.000000e+00> : vector<8x128xf32>
    %8 = tpu.matmul %6, %7, %cst_6 {dimension_numbers = #tpu.dot_dimension_numbers<[1], [0], [0], [1], [0, 0, 1, 1], [], []>} : vector<8x128xbf16>, vector<128x128xbf16>, vector<8x128xf32> -> vector<8x128xf32>
    %9 = arith.truncf %8 : vector<8x128xf32> to vector<8x128xbf16>
    %c0_7 = arith.constant 0 : index
    %c0_8 = arith.constant 0 : index
    %10 = vector.load %arg4[%c0_7, %c0_8] : memref<8x128xbf16, #tpu.memory_space<vmem>>, vector<8x128xbf16>
    tpu.vector_store %arg4[%c0_7, %c0_8], %9 {strides = array<i32>} : memref<8x128xbf16, #tpu.memory_space<vmem>>, vector<8x128xbf16>,
    return
  }
  func.func @transform_0(%arg0: i32) -> (i32, i32) {
    %c0_i32 = arith.constant 0 : i32
    %c0_i32_0 = arith.constant 0 : i32
    return %arg0, %c0_i32 : i32, i32
  }
  func.func @transform_1(%arg0: i32) -> (i32, i32) {
    %c0_i32 = arith.constant 0 : i32
    %c0_i32_0 = arith.constant 0 : i32
    %c0_i32_1 = arith.constant 0 : i32
    return %c0_i32, %c0_i32_0 : i32, i32
  }
  func.func @transform_2(%arg0: i32) -> (i32, i32) {
    %c0_i32 = arith.constant 0 : i32
    %c0_i32_0 = arith.constant 0 : i32
    %c0_i32_1 = arith.constant 0 : i32
    return %c0_i32, %c0_i32_0 : i32, i32
  }
  func.func @transform_3(%arg0: i32) -> (i32, i32) {
    %c0_i32 = arith.constant 0 : i32
    %c0_i32_0 = arith.constant 0 : i32
    return %arg0, %c0_i32 : i32, i32
  }
}

</mosaic_0001>

<llo_original>
// kernel: mnist_classifier_forward.1
$region0: #{mnist_classifier_forward.1}
  #allocation0 [shape = 'u32[]', space=smem, size = 0x4, offset = 0x4, fixed_abs, tag = 'smem constant byte address 0x4 - core index']
  #allocation1 [shape = 'u32[144,128]{1,0:T(1,128)}', space=vmem, size = 0x12000, scoped, tag = 'internal scratch']
  %s0 = inlined_call_operand.vmem [shape: f32[8,256], index: 0, kind: input, shape index: {}]
  %s1 = inlined_call_operand.vmem [shape: bf16[256,128], index: 1, kind: input, shape index: {}]
  %s2 = inlined_call_operand.hbm [shape: bf16[128,128], index: 2, kind: input, shape index: {}]
  %s3 = inlined_call_operand.hbm [shape: bf16[8,128], index: 3, kind: output, shape index: {}]
  %s4 = sld [smem:[#allocation0]]
  $region26: #{mnist_classifier_forward.1} parent=0
    _
  %s6 = ssub.s32 1, %s4
  %s7 = scalar_select 0, %s6, %s4
  $region1: #{mnist_classifier_forward.1} parent=0
    #allocation2 [shape = 'u8[32768]{0}', space=vmem, size = 0x8000, scoped, tag = 'input window, operand 2, single buffered']
    #allocation3 [shape = 's32[1]{0}', space=sflag, size = 0x4, scoped, tag = 'scoped memory for mnist_classifier_forward.1']
    #allocation4 [shape = 's32[1]{0}', space=sflag, size = 0x4, scoped, tag = 'scoped memory for mnist_classifier_forward.1']
    #allocation5 [shape = 'u8[2048]{0}', space=vmem, size = 0x800, scoped, tag = 'output window, operand 0, single buffered']
    %8 = vsyncpa [#allocation3], 0
    %9 = vsyncpa [#allocation4], 0
    // Predicated region
    $region2: #{mnist_classifier_forward.1} parent=1 // pred_check
      _
    $region3: #{mnist_classifier_forward.1} parent=1 // pred_check_branch
      %11 = sbr.rel (0) target = $region5
    $region4: #{mnist_classifier_forward.1} parent=1 // pred_region
      _
    $region5: #{mnist_classifier_forward.1} parent=1 // pred_fallthru
      _
    // Predicated region
    $region6: #{mnist_classifier_forward.1} parent=1 // pred_check
      _
    $region7: #{mnist_classifier_forward.1} parent=1 // pred_check_branch
      %13 = sbr.rel (0) target = $region9
    $region8: #{mnist_classifier_forward.1} parent=1 // pred_region
      _
    $region9: #{mnist_classifier_forward.1} parent=1 // pred_fallthru
      _
    // Predicated region
    $region10: #{mnist_classifier_forward.1} parent=1 // pred_check
      _
    $region11: #{mnist_classifier_forward.1} parent=1 // pred_check_branch
      %15 = sbr.rel (0) target = $region13
    $region12: #{mnist_classifier_forward.1} parent=1 // pred_region
      %s17 = ssub.s32 1024, 1024
      %18 = vsyncadd [#allocation3], %s17
      %s19 = sshll.u32 [#allocation2], 4
      %s20 = int_to_ptr.vmem [resolvable:$true] %s19
      %25 = dma.hbm_to_vmem [thread:$0]  %s2, 1024, %s20, [#allocation3], 64, 64, 4
    $region13: #{mnist_classifier_forward.1} parent=1 // pred_fallthru
      _
    // Predicated region
    $region14: #{mnist_classifier_forward.1} parent=1 // pred_check
      _
    $region15: #{mnist_classifier_forward.1} parent=1 // pred_check_branch
      %27 = sbr.rel (0) target = $region17
    $region16: #{mnist_classifier_forward.1} parent=1 // pred_region
      %28 = dma.done [#allocation3], 1024
    $region17: #{mnist_classifier_forward.1} parent=1 // pred_fallthru
      _
    %v30 = vld [vmem:[%s0] sm:$0xff]
    %v31 = vld [vmem:[%s0 + $0x8] sm:$0xff]
    %v32 = vpack.c.bf16 %v30, %v30
    %v33 = vpack.c.bf16 %v31, %v31
    %v34 = vld [vmem:[%s1] sm:$0xf]
    %v35 = vld [vmem:[%s1 + $0x4] sm:$0xf]
    %v36 = vld [vmem:[%s1 + $0x8] sm:$0xf]
    %v37 = vld [vmem:[%s1 + $0xc] sm:$0xf]
    %v38 = vld [vmem:[%s1 + $0x10] sm:$0xf]
    %v39 = vld [vmem:[%s1 + $0x14] sm:$0xf]
    %v40 = vld [vmem:[%s1 + $0x18] sm:$0xf]
    %v41 = vld [vmem:[%s1 + $0x1c] sm:$0xf]
    %v42 = vld [vmem:[%s1 + $0x20] sm:$0xf]
    %v43 = vld [vmem:[%s1 + $0x24] sm:$0xf]
    %v44 = vld [vmem:[%s1 + $0x28] sm:$0xf]
    %v45 = vld [vmem:[%s1 + $0x2c] sm:$0xf]
    %v46 = vld [vmem:[%s1 + $0x30] sm:$0xf]
    %v47 = vld [vmem:[%s1 + $0x34] sm:$0xf]
    %v48 = vld [vmem:[%s1 + $0x38] sm:$0xf]
    %v49 = vld [vmem:[%s1 + $0x3c] sm:$0xf]
    %v50 = vld [vmem:[%s1 + $0x40] sm:$0xf]
    %v51 = vld [vmem:[%s1 + $0x44] sm:$0xf]
    %v52 = vld [vmem:[%s1 + $0x48] sm:$0xf]
    %v53 = vld [vmem:[%s1 + $0x4c] sm:$0xf]
    %v54 = vld [vmem:[%s1 + $0x50] sm:$0xf]
    %v55 = vld [vmem:[%s1 + $0x54] sm:$0xf]
    %v56 = vld [vmem:[%s1 + $0x58] sm:$0xf]
    %v57 = vld [vmem:[%s1 + $0x5c] sm:$0xf]
    %v58 = vld [vmem:[%s1 + $0x60] sm:$0xf]
    %v59 = vld [vmem:[%s1 + $0x64] sm:$0xf]
    %v60 = vld [vmem:[%s1 + $0x68] sm:$0xf]
    %v61 = vld [vmem:[%s1 + $0x6c] sm:$0xf]
    %v62 = vld [vmem:[%s1 + $0x70] sm:$0xf]
    %v63 = vld [vmem:[%s1 + $0x74] sm:$0xf]
    %v64 = vld [vmem:[%s1 + $0x78] sm:$0xf]
    %v65 = vld [vmem:[%s1 + $0x7c] sm:$0xf]
    %v98 = vunpack.c.l.b16 %v34
    %v99 = vunpack.c.l.b16 %v35
    %v100 = vunpack.c.l.b16 %v36
    %v101 = vunpack.c.l.b16 %v37
    %v102 = vunpack.c.l.b16 %v38
    %v103 = vunpack.c.l.b16 %v39
    %v104 = vunpack.c.l.b16 %v40
    %v105 = vunpack.c.l.b16 %v41
    %v106 = vunpack.c.l.b16 %v42
    %v107 = vunpack.c.l.b16 %v43
    %v108 = vunpack.c.l.b16 %v44
    %v109 = vunpack.c.l.b16 %v45
    %v110 = vunpack.c.l.b16 %v46
    %v111 = vunpack.c.l.b16 %v47
    %v112 = vunpack.c.l.b16 %v48
    %v113 = vunpack.c.l.b16 %v49
    %v114 = vunpack.c.l.b16 %v50
    %v115 = vunpack.c.l.b16 %v51
    %v116 = vunpack.c.l.b16 %v52
    %v117 = vunpack.c.l.b16 %v53
    %v118 = vunpack.c.l.b16 %v54
    %v119 = vunpack.c.l.b16 %v55
    %v120 = vunpack.c.l.b16 %v56
    %v121 = vunpack.c.l.b16 %v57
    %v122 = vunpack.c.l.b16 %v58
    %v123 = vunpack.c.l.b16 %v59
    %v124 = vunpack.c.l.b16 %v60
    %v125 = vunpack.c.l.b16 %v61
    %v126 = vunpack.c.l.b16 %v62
    %v127 = vunpack.c.l.b16 %v63
    %v128 = vunpack.c.l.b16 %v64
    %v129 = vunpack.c.l.b16 %v65
    %v130 = vpack.c.b16 %v99, %v98
    %v131 = vpack.c.b16 %v101, %v100
    %v132 = vpack.c.b16 %v103, %v102
    %v133 = vpack.c.b16 %v105, %v104
    %v134 = vpack.c.b16 %v107, %v106
    %v135 = vpack.c.b16 %v109, %v108
    %v136 = vpack.c.b16 %v111, %v110
    %v137 = vpack.c.b16 %v113, %v112
    %v138 = vpack.c.b16 %v115, %v114
    %v139 = vpack.c.b16 %v117, %v116
    %v140 = vpack.c.b16 %v119, %v118
    %v141 = vpack.c.b16 %v121, %v120
    %v142 = vpack.c.b16 %v123, %v122
    %v143 = vpack.c.b16 %v125, %v124
    %v144 = vpack.c.b16 %v127, %v126
    %v145 = vpack.c.b16 %v129, %v128
    %162 = vmatprep.subr.bf16.mxu0 0
    %163 = vmatpush1.bf16.msra.mxu0 %v137
    %164 = vmatprep.subr.bf16.mxu0 0
    %165 = vmatpush1.bf16.msra.mxu0 %v136
    %166 = vmatprep.subr.bf16.mxu0 0
    %167 = vmatpush1.bf16.msra.mxu0 %v135
    %168 = vmatprep.subr.bf16.mxu0 0
    %169 = vmatpush1.bf16.msra.mxu0 %v134
    %170 = vmatprep.subr.bf16.mxu0 0
    %171 = vmatpush1.bf16.msra.mxu0 %v133
    %172 = vmatprep.subr.bf16.mxu0 0
    %173 = vmatpush1.bf16.msra.mxu0 %v132
    %174 = vmatprep.subr.bf16.mxu0 0
    %175 = vmatpush1.bf16.msra.mxu0 %v131
    %176 = vmatprep.subr.bf16.mxu0 0
    %177 = vmatpush1.bf16.msra.mxu0 %v130
    %178 = vmatprep.subr.bf16.mxu0 0
    %179 = vmatpush2.bf16.msra.mxu0 %v145
    %180 = vmatprep.subr.bf16.mxu0 0
    %181 = vmatpush2.bf16.msra.mxu0 %v144
    %182 = vmatprep.subr.bf16.mxu0 0
    %183 = vmatpush2.bf16.msra.mxu0 %v143
    %184 = vmatprep.subr.bf16.mxu0 0
    %185 = vmatpush2.bf16.msra.mxu0 %v142
    %186 = vmatprep.subr.bf16.mxu0 0
    %187 = vmatpush2.bf16.msra.mxu0 %v141
    %188 = vmatprep.subr.bf16.mxu0 0
    %189 = vmatpush2.bf16.msra.mxu0 %v140
    %190 = vmatprep.subr.bf16.mxu0 0
    %191 = vmatpush2.bf16.msra.mxu0 %v139
    %192 = vmatprep.subr.bf16.mxu0 0
    %193 = vmatpush2.bf16.msra.mxu0 %v138
    %194 = vmatprep.mubr.bf16.mxu0 %v33
    %195 = vmatmul.mubr.bf16.gmra.mxu0 %v32
    %v196 = vpop.f32.mrf.mxu0
    %v197 = vadd.f32 0.0, %v196
    %v198 = vpop.f32.mrf.mxu0
    %v199 = vpop.f32.mrf.mxu0
    %v200 = vpop.f32.mrf.mxu0
    %201 = vdwg.mxu0
    %v202 = vmax.f32 %v197, 0.0
    %v203 = vpack.c.bf16 %v202, %v202
    %v204 = vld [vmem:[#allocation2] sm:$0xf]
    %v205 = vld [vmem:[#allocation2 + $0x4] sm:$0xf]
    %v206 = vld [vmem:[#allocation2 + $0x8] sm:$0xf]
    %v207 = vld [vmem:[#allocation2 + $0xc] sm:$0xf]
    %v208 = vld [vmem:[#allocation2 + $0x10] sm:$0xf]
    %v209 = vld [vmem:[#allocation2 + $0x14] sm:$0xf]
    %v210 = vld [vmem:[#allocation2 + $0x18] sm:$0xf]
    %v211 = vld [vmem:[#allocation2 + $0x1c] sm:$0xf]
    %v212 = vld [vmem:[#allocation2 + $0x20] sm:$0xf]
    %v213 = vld [vmem:[#allocation2 + $0x24] sm:$0xf]
    %v214 = vld [vmem:[#allocation2 + $0x28] sm:$0xf]
    %v215 = vld [vmem:[#allocation2 + $0x2c] sm:$0xf]
    %v216 = vld [vmem:[#allocation2 + $0x30] sm:$0xf]
    %v217 = vld [vmem:[#allocation2 + $0x34] sm:$0xf]
    %v218 = vld [vmem:[#allocation2 + $0x38] sm:$0xf]
    %v219 = vld [vmem:[#allocation2 + $0x3c] sm:$0xf]
    %v236 = vunpack.c.l.b16 %v204
    %v237 = vunpack.c.l.b16 %v205
    %v238 = vunpack.c.l.b16 %v206
    %v239 = vunpack.c.l.b16 %v207
    %v240 = vunpack.c.l.b16 %v208
    %v241 = vunpack.c.l.b16 %v209
    %v242 = vunpack.c.l.b16 %v210
    %v243 = vunpack.c.l.b16 %v211
    %v244 = vunpack.c.l.b16 %v212
    %v245 = vunpack.c.l.b16 %v213
    %v246 = vunpack.c.l.b16 %v214
    %v247 = vunpack.c.l.b16 %v215
    %v248 = vunpack.c.l.b16 %v216
    %v249 = vunpack.c.l.b16 %v217
    %v250 = vunpack.c.l.b16 %v218
    %v251 = vunpack.c.l.b16 %v219
    %v252 = vpack.c.b16 %v237, %v236
    %v253 = vpack.c.b16 %v239, %v238
    %v254 = vpack.c.b16 %v241, %v240
    %v255 = vpack.c.b16 %v243, %v242
    %v256 = vpack.c.b16 %v245, %v244
    %v257 = vpack.c.b16 %v247, %v246
    %v258 = vpack.c.b16 %v249, %v248
    %v259 = vpack.c.b16 %v251, %v250
    %268 = vmatprep.subr.bf16.mxu0 0
    %269 = vmatpush1.bf16.msra.mxu0 %v259
    %270 = vmatprep.subr.bf16.mxu0 0
    %271 = vmatpush1.bf16.msra.mxu0 %v258
    %272 = vmatprep.subr.bf16.mxu0 0
    %273 = vmatpush1.bf16.msra.mxu0 %v257
    %274 = vmatprep.subr.bf16.mxu0 0
    %275 = vmatpush1.bf16.msra.mxu0 %v256
    %276 = vmatprep.subr.bf16.mxu0 0
    %277 = vmatpush1.bf16.msra.mxu0 %v255
    %278 = vmatprep.subr.bf16.mxu0 0
    %279 = vmatpush1.bf16.msra.mxu0 %v254
    %280 = vmatprep.subr.bf16.mxu0 0
    %281 = vmatpush1.bf16.msra.mxu0 %v253
    %282 = vmatprep.subr.bf16.mxu0 0
    %283 = vmatpush1.bf16.msra.mxu0 %v252
    %284 = vmatprep.subr.bf16.mxu0 0
    %285 = vmatpush2.bf16.msra.mxu0 0
    %286 = vmatprep.subr.bf16.mxu0 0
    %287 = vmatpush2.bf16.msra.mxu0 0
    %288 = vmatprep.subr.bf16.mxu0 0
    %289 = vmatpush2.bf16.msra.mxu0 0
    %290 = vmatprep.subr.bf16.mxu0 0
    %291 = vmatpush2.bf16.msra.mxu0 0
    %292 = vmatprep.subr.bf16.mxu0 0
    %293 = vmatpush2.bf16.msra.mxu0 0
    %294 = vmatprep.subr.bf16.mxu0 0
    %295 = vmatpush2.bf16.msra.mxu0 0
    %296 = vmatprep.subr.bf16.mxu0 0
    %297 = vmatpush2.bf16.msra.mxu0 0
    %298 = vmatprep.subr.bf16.mxu0 0
    %299 = vmatpush2.bf16.msra.mxu0 0
    %300 = vmatprep.mubr.bf16.mxu0 0
    %301 = vmatmul.mubr.bf16.gmra.mxu0 %v203
    %v302 = vpop.f32.mrf.mxu0
    %v303 = vadd.f32 0.0, %v302
    %v304 = vpop.f32.mrf.mxu0
    %v305 = vpop.f32.mrf.mxu0
    %v306 = vpop.f32.mrf.mxu0
    %307 = vdwg.mxu0
    %v308 = vpack.c.bf16 %v303, %v303
    %309 = vst [vmem:[#allocation5] sm:$0xf] %v308
    // Predicated region
    $region18: #{mnist_classifier_forward.1} parent=1 // pred_check
      _
    $region19: #{mnist_classifier_forward.1} parent=1 // pred_check_branch
      %311 = sbr.rel (0) target = $region21
    $region20: #{mnist_classifier_forward.1} parent=1 // pred_region
      %s313 = ssub.s32 64, 64
      %314 = vsyncadd [#allocation4], %s313
      %s316 = sshll.u32 [#allocation5], 4
      %s317 = int_to_ptr.vmem [resolvable:$true] %s316
      %319 = dma.vmem_to_hbm [thread:$0]  %s317, 64, %s3, [#allocation4]
    $region21: #{mnist_classifier_forward.1} parent=1 // pred_fallthru
      _
    // Predicated region
    $region22: #{mnist_classifier_forward.1} parent=1 // pred_check
      _
    $region23: #{mnist_classifier_forward.1} parent=1 // pred_check_branch
      %321 = sbr.rel (0) target = $region25
    $region24: #{mnist_classifier_forward.1} parent=1 // pred_region
      %322 = dma.done [#allocation4], 64
    $region25: #{mnist_classifier_forward.1} parent=1 // pred_fallthru
      _
    %323 = vsyncpa [#allocation3], 1
    %324 = vsyncpa [#allocation4], 1

</llo_original>
